<compile_context>
chip_gen: v7x
topology: tpu7x:2x2x1
jax: 0.10.0
libtpu: 0.0.40
codegen_flags: <defaults>
</compile_context>

<pallas_src>
import functools

import jax
import jax.numpy as jnp
from jax.experimental import pallas as pl
from jax.experimental.pallas import tpu as pltpu

NEG_SLOPE = 0.01   # nn.LeakyReLU() default
LN_EPS = 1e-5      # nn.LayerNorm default

# Row indices inside the packed (8, E) vector input.
_B1, _G1, _BE1, _B2, _G2, _BE2, _PAD = 0, 1, 2, 3, 4, 5, 6


def _leaky_relu(x):
    return jnp.where(x > 0, x, NEG_SLOPE * x)


def _layer_norm(x, gamma, beta):
    # LayerNorm over the last (lane) axis; gamma/beta are (1, E) and broadcast.
    mu = jnp.mean(x, axis=-1, keepdims=True)
    var = jnp.mean((x - mu) * (x - mu), axis=-1, keepdims=True)
    return (x - mu) * jax.lax.rsqrt(var + LN_EPS) * gamma + beta


def _acs_encoder_kernel(acs_ref, w1_ref, vec_ref, w2_ref, out_ref,
                        *, do_shift, matmul_dtype):
    """One (tile_t, A) tile of actions -> one (tile_t, E) tile of embeddings."""
    x = acs_ref[...].astype(jnp.float32)

    b1 = vec_ref[_B1:_B1 + 1, :]
    g1 = vec_ref[_G1:_G1 + 1, :]
    be1 = vec_ref[_BE1:_BE1 + 1, :]
    b2 = vec_ref[_B2:_B2 + 1, :]
    g2 = vec_ref[_G2:_G2 + 1, :]
    be2 = vec_ref[_BE2:_BE2 + 1, :]

    # Linear 1 (K = acs_dim, tiny) + LeakyReLU + LayerNorm 1.
    # NOTE: for acs_dim <= 8 a VPU rank-1 broadcast-MAC could bypass the
    # near-empty MXU push/pop; kept as a dot for lowering robustness since
    # this matmul is negligible next to the E x E one at realistic shapes.
    h = jnp.dot(x, w1_ref[...].astype(jnp.float32),
                preferred_element_type=jnp.float32) + b1
    h = _leaky_relu(h)
    h = _layer_norm(h, g1, be1)

    # Linear 2 (E x E) + LeakyReLU + LayerNorm 2.  bf16 MXU operands on the
    # fast path; accumulation and all elementwise math stay f32.
    h2 = jnp.dot(h.astype(matmul_dtype), w2_ref[...],
                 preferred_element_type=jnp.float32) + b2
    h2 = _leaky_relu(h2)
    h2 = _layer_norm(h2, g2, be2)

    out_ref[...] = h2.astype(out_ref.dtype)

    if do_shift:
        # SAR alignment: output row 0 of the trajectory is the padding row.
        # (The wrapper feeds acs shifted forward by one step, so every other
        # row is already correct.)
        @pl.when(pl.program_id(0) == 0)
        def _():
            out_ref[0:1, :] = vec_ref[_PAD:_PAD + 1, :].astype(out_ref.dtype)


def _pick_tile_t(T, A, E):
    """Largest multiple-of-8 row tile under a conservative VMEM budget.

    The budget keeps the double-buffered (tile_t, A) + (tile_t, E) f32 blocks
    plus the resident weights well inside the default scoped VMEM limit, with
    headroom for v7x (64 MiB physical VMEM, ~32 MiB scoped default).
    """
    if T <= 8:
        return T
    budget = 8 * 1024 * 1024                 # bytes for the pipelined tiles
    per_row = 4 * (A + E) * 2                # f32, in + out block, double-buffered
    t = min(T, max(8, budget // max(per_row, 1)), 1024)
    return max(8, (t // 8) * 8)


def continuous_acs_encoder(acs, params, shift_padding=None, *,
                           tile_t=None, matmul_dtype=jnp.bfloat16):
    """Fused MLP action encoder.  acs: (traj_len, acs_dim) float32."""
    T, A = acs.shape
    E = params["w1"].shape[1]

    if tile_t is None:
        tile_t = _pick_tile_t(T, A, E)
    if T < 8:
        tile_t = T
    else:
        tile_t = max(8, (min(tile_t, T) // 8) * 8)
    grid_t = pl.cdiv(T, tile_t)

    do_shift = shift_padding is not None
    if do_shift:
        # Shift the INPUT one step forward ((T, A) bytes, A << E) instead of
        # concatenating the (T, E) output; row 0 of the output gets the
        # padding row inside the kernel.
        acs_in = jnp.concatenate(
            [jnp.zeros((1, A), acs.dtype), acs[:-1]], axis=0)
        pad_row = shift_padding.reshape(1, E).astype(jnp.float32)
    else:
        acs_in = acs
        pad_row = jnp.zeros((1, E), jnp.float32)

    # Pack all per-feature vectors (+ padding row) into one resident (8, E)
    # array: a single DMA instead of seven.
    vecs = jnp.concatenate(
        [params["b1"].reshape(1, E),
         params["ln1_w"].reshape(1, E),
         params["ln1_b"].reshape(1, E),
         params["b2"].reshape(1, E),
         params["ln2_w"].reshape(1, E),
         params["ln2_b"].reshape(1, E),
         pad_row,
         jnp.zeros((1, E), jnp.float32)],
        axis=0).astype(jnp.float32)

    w1 = params["w1"].astype(jnp.float32)
    w2 = params["w2"].astype(matmul_dtype)   # halves resident-weight bytes on the bf16 path

    kernel = functools.partial(_acs_encoder_kernel,
                               do_shift=do_shift, matmul_dtype=matmul_dtype)

    # TODO(synk): for emb_dim < 128 the output tile is lane-sparse (masked
    # vst); fold groups of 128 // emb_dim rows into the lane axis for the
    # store (or use a lane-multiple emb_dim, as in the demo) to keep stores
    # unmasked.
    out = pl.pallas_call(
        kernel,
        out_shape=jax.ShapeDtypeStruct((T, E), acs.dtype),
        grid=(grid_t,),
        in_specs=[
            pl.BlockSpec((tile_t, A), lambda i: (i, 0)),   # streamed per tile
            pl.BlockSpec((A, E), lambda i: (0, 0)),        # resident
            pl.BlockSpec((8, E), lambda i: (0, 0)),        # resident packed vectors
            pl.BlockSpec((E, E), lambda i: (0, 0)),        # resident
        ],
        out_specs=pl.BlockSpec((tile_t, E), lambda i: (i, 0)),
        compiler_params=pltpu.CompilerParams(
            dimension_semantics=("parallel",),             # shards T tiles across TCs on v7x
        ),
    )(acs_in, w1, vecs, w2)
    return out


def init_params(key, acs_dim, emb_dim):
    """Deterministic synthetic parameters matching the PyTorch module shapes."""
    k1, k2, k3, k4 = jax.random.split(key, 4)
    # nn.Linear weights are (out, in) in torch; we store transposed (in, out).
    bound1 = 1.0 / jnp.sqrt(acs_dim)
    bound2 = 1.0 / jnp.sqrt(emb_dim)
    return {
        "w1": jax.random.uniform(k1, (acs_dim, emb_dim), jnp.float32, -bound1, bound1),
        "b1": jax.random.uniform(k2, (1, emb_dim), jnp.float32, -bound1, bound1),
        "ln1_w": jnp.ones((1, emb_dim), jnp.float32),
        "ln1_b": jnp.zeros((1, emb_dim), jnp.float32),
        "w2": jax.random.uniform(k3, (emb_dim, emb_dim), jnp.float32, -bound2, bound2),
        "b2": jax.random.uniform(k4, (1, emb_dim), jnp.float32, -bound2, bound2),
        "ln2_w": jnp.ones((1, emb_dim), jnp.float32),
        "ln2_b": jnp.zeros((1, emb_dim), jnp.float32),
    }


def _reference(acs, params, shift_padding=None, matmul_dtype=jnp.float32):
    """Pure-JAX reference (matmul_dtype controls the second-matmul operands)."""
    h = acs @ params["w1"] + params["b1"]
    h = jnp.where(h > 0, h, NEG_SLOPE * h)
    mu = h.mean(-1, keepdims=True)
    var = ((h - mu) ** 2).mean(-1, keepdims=True)
    h = (h - mu) / jnp.sqrt(var + LN_EPS) * params["ln1_w"] + params["ln1_b"]
    h = jnp.dot(h.astype(matmul_dtype), params["w2"].astype(matmul_dtype),
                preferred_element_type=jnp.float32) + params["b2"]
    h = jnp.where(h > 0, h, NEG_SLOPE * h)
    mu = h.mean(-1, keepdims=True)
    var = ((h - mu) ** 2).mean(-1, keepdims=True)
    h = (h - mu) / jnp.sqrt(var + LN_EPS) * params["ln2_w"] + params["ln2_b"]
    if shift_padding is not None:
        h = jnp.concatenate([shift_padding, h[:-1]], axis=0)
    return h


if __name__ == "__main__":
    # Small shapes consistent with the module, but lane-dense (E % 128 == 0)
    # and with several row tiles so the software pipeline is exercised.
    traj_len, acs_dim, emb_dim = 256, 4, 128
    tile_t = 64   # -> grid of 4 trajectory tiles

    key = jax.random.PRNGKey(0)
    k_params, k_acs, k_pad = jax.random.split(key, 3)

    params = init_params(k_params, acs_dim, emb_dim)
    acs = jax.random.normal(k_acs, (traj_len, acs_dim), jnp.float32)
    shift_padding = jax.random.normal(k_pad, (1, emb_dim), jnp.float32)

    # --- f32 MXU-operand path (bit-faithful to the reference math) ----------
    out = continuous_acs_encoder(acs, params, tile_t=tile_t,
                                 matmul_dtype=jnp.float32)
    out = jax.block_until_ready(out)
    ref = _reference(acs, params)
    assert out.shape == (traj_len, emb_dim)
    assert jnp.allclose(out, ref, atol=1e-4, rtol=1e-4), \
        f"f32 path max err {jnp.max(jnp.abs(out - ref))}"

    # With shift padding (1-step forward shift for SAR alignment)
    out_s = continuous_acs_encoder(acs, params, shift_padding, tile_t=tile_t,
                                   matmul_dtype=jnp.float32)
    out_s = jax.block_until_ready(out_s)
    ref_s = _reference(acs, params, shift_padding)
    assert out_s.shape == (traj_len, emb_dim)
    assert jnp.allclose(out_s, ref_s, atol=1e-4, rtol=1e-4), \
        f"f32+shift path max err {jnp.max(jnp.abs(out_s - ref_s))}"

    # --- bf16 MXU-operand fast path (default; v6e/v7x) -----------------------
    out_b = continuous_acs_encoder(acs, params, shift_padding, tile_t=tile_t)
    out_b = jax.block_until_ready(out_b)
    ref_b = _reference(acs, params, shift_padding, matmul_dtype=jnp.bfloat16)
    assert jnp.allclose(out_b, ref_b, atol=5e-3, rtol=5e-3), \
        f"bf16 path vs bf16 ref max err {jnp.max(jnp.abs(out_b - ref_b))}"
    assert jnp.allclose(out_b, ref_s, atol=1e-1, rtol=1e-1), \
        f"bf16 path vs f32 ref max err {jnp.max(jnp.abs(out_b - ref_s))}"

    print("KERNEL_OK")
</pallas_src>

<mosaic_0001>
module attributes {stable_mosaic.version = 11 : i64} {
  func.func @_acs_encoder_kernel(%arg0: i32, %arg1: memref<64x4xf32, #tpu.memory_space<vmem>>, %arg2: memref<4x128xf32, #tpu.memory_space<vmem>>, %arg3: memref<8x128xf32, #tpu.memory_space<vmem>>, %arg4: memref<128x128xf32, #tpu.memory_space<vmem>>, %arg5: memref<64x128xf32, #tpu.memory_space<vmem>>) attributes {dimension_semantics = [#tpu.dimension_semantics<parallel>], iteration_bounds = array<i64: 4>, scalar_prefetch = 0 : i64, scratch_operands = 0 : i64, tpu.core_type = #tpu.core_type<tc>, window_params = [{transform_indices = @transform_0, window_bounds = array<i64: 64, 4>}, {pipeline_mode = #tpu.pipeline_mode<synchronous>, transform_indices = @transform_1, window_bounds = array<i64: 4, 128>}, {pipeline_mode = #tpu.pipeline_mode<synchronous>, transform_indices = @transform_2, window_bounds = array<i64: 8, 128>}, {pipeline_mode = #tpu.pipeline_mode<synchronous>, transform_indices = @transform_3, window_bounds = array<i64: 128, 128>}, {transform_indices = @transform_4, window_bounds = array<i64: 64, 128>}]} {
    %c0 = arith.constant 0 : index
    %c0_0 = arith.constant 0 : index
    %0 = vector.load %arg1[%c0, %c0_0] : memref<64x4xf32, #tpu.memory_space<vmem>>, vector<64x4xf32>
    %c0_1 = arith.constant 0 : index
    %c0_2 = arith.constant 0 : index
    %1 = vector.load %arg3[%c0_1, %c0_2] : memref<8x128xf32, #tpu.memory_space<vmem>>, vector<1x128xf32>
    %c1 = arith.constant 1 : index
    %c0_3 = arith.constant 0 : index
    %2 = vector.load %arg3[%c1, %c0_3] : memref<8x128xf32, #tpu.memory_space<vmem>>, vector<1x128xf32>
    %c2 = arith.constant 2 : index
    %c0_4 = arith.constant 0 : index
    %3 = vector.load %arg3[%c2, %c0_4] : memref<8x128xf32, #tpu.memory_space<vmem>>, vector<1x128xf32>
    %c3 = arith.constant 3 : index
    %c0_5 = arith.constant 0 : index
    %4 = vector.load %arg3[%c3, %c0_5] : memref<8x128xf32, #tpu.memory_space<vmem>>, vector<1x128xf32>
    %c4 = arith.constant 4 : index
    %c0_6 = arith.constant 0 : index
    %5 = vector.load %arg3[%c4, %c0_6] : memref<8x128xf32, #tpu.memory_space<vmem>>, vector<1x128xf32>
    %c5 = arith.constant 5 : index
    %c0_7 = arith.constant 0 : index
    %6 = vector.load %arg3[%c5, %c0_7] : memref<8x128xf32, #tpu.memory_space<vmem>>, vector<1x128xf32>
    %c0_8 = arith.constant 0 : index
    %c0_9 = arith.constant 0 : index
    %7 = vector.load %arg2[%c0_8, %c0_9] : memref<4x128xf32, #tpu.memory_space<vmem>>, vector<4x128xf32>
    %cst = arith.constant dense<0.000000e+00> : vector<64x128xf32>
    %8 = tpu.matmul %0, %7, %cst {dimension_numbers = #tpu.dot_dimension_numbers<[1], [0], [0], [1], [0, 0, 1, 1], [], []>} : vector<64x4xf32>, vector<4x128xf32>, vector<64x128xf32> -> vector<64x128xf32>
    %9 = vector.broadcast %1 : vector<1x128xf32> to vector<64x128xf32>
    %10 = arith.addf %8, %9 : vector<64x128xf32>
    %cst_10 = arith.constant 0.000000e+00 : f32
    %11 = vector.broadcast %cst_10 : f32 to vector<64x128xf32>
    %12 = arith.cmpf ogt, %10, %11 : vector<64x128xf32>
    %cst_11 = arith.constant 0.00999999977 : f32
    %13 = vector.broadcast %cst_11 : f32 to vector<64x128xf32>
    %14 = arith.mulf %13, %10 : vector<64x128xf32>
    %15 = arith.select %12, %10, %14 : vector<64x128xi1>, vector<64x128xf32>
    %cst_12 = arith.constant dense<0.000000e+00> : vector<64xf32>
    %16 = vector.multi_reduction <add>, %15, %cst_12 [1] : vector<64x128xf32> to vector<64xf32>
    %17 = vector.shape_cast %16 : vector<64xf32> to vector<64x1xf32>
    %cst_13 = arith.constant 1.280000e+02 : f32
    %18 = vector.broadcast %cst_13 : f32 to vector<64x1xf32>
    %19 = arith.divf %17, %18 : vector<64x1xf32>
    %20 = vector.broadcast %19 : vector<64x1xf32> to vector<64x128xf32>
    %21 = arith.subf %15, %20 : vector<64x128xf32>
    %22 = vector.broadcast %19 : vector<64x1xf32> to vector<64x128xf32>
    %23 = arith.subf %15, %22 : vector<64x128xf32>
    %24 = arith.mulf %21, %23 : vector<64x128xf32>
    %cst_14 = arith.constant dense<0.000000e+00> : vector<64xf32>
    %25 = vector.multi_reduction <add>, %24, %cst_14 [1] : vector<64x128xf32> to vector<64xf32>
    %26 = vector.shape_cast %25 : vector<64xf32> to vector<64x1xf32>
    %cst_15 = arith.constant 1.280000e+02 : f32
    %27 = vector.broadcast %cst_15 : f32 to vector<64x1xf32>
    %28 = arith.divf %26, %27 : vector<64x1xf32>
    %29 = vector.broadcast %19 : vector<64x1xf32> to vector<64x128xf32>
    %30 = arith.subf %15, %29 : vector<64x128xf32>
    %cst_16 = arith.constant 9.99999974E-6 : f32
    %31 = vector.broadcast %cst_16 : f32 to vector<64x1xf32>
    %32 = arith.addf %28, %31 : vector<64x1xf32>
    %33 = math.rsqrt %32 : vector<64x1xf32>
    %34 = vector.broadcast %33 : vector<64x1xf32> to vector<64x128xf32>
    %35 = arith.mulf %30, %34 : vector<64x128xf32>
    %36 = vector.broadcast %2 : vector<1x128xf32> to vector<64x128xf32>
    %37 = arith.mulf %35, %36 : vector<64x128xf32>
    %38 = vector.broadcast %3 : vector<1x128xf32> to vector<64x128xf32>
    %39 = arith.addf %37, %38 : vector<64x128xf32>
    %c0_17 = arith.constant 0 : index
    %c0_18 = arith.constant 0 : index
    %40 = vector.load %arg4[%c0_17, %c0_18] : memref<128x128xf32, #tpu.memory_space<vmem>>, vector<128x128xf32>
    %cst_19 = arith.constant dense<0.000000e+00> : vector<64x128xf32>
    %41 = tpu.matmul %39, %40, %cst_19 {dimension_numbers = #tpu.dot_dimension_numbers<[1], [0], [0], [1], [0, 0, 1, 1], [], []>} : vector<64x128xf32>, vector<128x128xf32>, vector<64x128xf32> -> vector<64x128xf32>
    %42 = vector.broadcast %4 : vector<1x128xf32> to vector<64x128xf32>
    %43 = arith.addf %41, %42 : vector<64x128xf32>
    %cst_20 = arith.constant 0.000000e+00 : f32
    %44 = vector.broadcast %cst_20 : f32 to vector<64x128xf32>
    %45 = arith.cmpf ogt, %43, %44 : vector<64x128xf32>
    %cst_21 = arith.constant 0.00999999977 : f32
    %46 = vector.broadcast %cst_21 : f32 to vector<64x128xf32>
    %47 = arith.mulf %46, %43 : vector<64x128xf32>
    %48 = arith.select %45, %43, %47 : vector<64x128xi1>, vector<64x128xf32>
    %cst_22 = arith.constant dense<0.000000e+00> : vector<64xf32>
    %49 = vector.multi_reduction <add>, %48, %cst_22 [1] : vector<64x128xf32> to vector<64xf32>
    %50 = vector.shape_cast %49 : vector<64xf32> to vector<64x1xf32>
    %cst_23 = arith.constant 1.280000e+02 : f32
    %51 = vector.broadcast %cst_23 : f32 to vector<64x1xf32>
    %52 = arith.divf %50, %51 : vector<64x1xf32>
    %53 = vector.broadcast %52 : vector<64x1xf32> to vector<64x128xf32>
    %54 = arith.subf %48, %53 : vector<64x128xf32>
    %55 = vector.broadcast %52 : vector<64x1xf32> to vector<64x128xf32>
    %56 = arith.subf %48, %55 : vector<64x128xf32>
    %57 = arith.mulf %54, %56 : vector<64x128xf32>
    %cst_24 = arith.constant dense<0.000000e+00> : vector<64xf32>
    %58 = vector.multi_reduction <add>, %57, %cst_24 [1] : vector<64x128xf32> to vector<64xf32>
    %59 = vector.shape_cast %58 : vector<64xf32> to vector<64x1xf32>
    %cst_25 = arith.constant 1.280000e+02 : f32
    %60 = vector.broadcast %cst_25 : f32 to vector<64x1xf32>
    %61 = arith.divf %59, %60 : vector<64x1xf32>
    %62 = vector.broadcast %52 : vector<64x1xf32> to vector<64x128xf32>
    %63 = arith.subf %48, %62 : vector<64x128xf32>
    %cst_26 = arith.constant 9.99999974E-6 : f32
    %64 = vector.broadcast %cst_26 : f32 to vector<64x1xf32>
    %65 = arith.addf %61, %64 : vector<64x1xf32>
    %66 = math.rsqrt %65 : vector<64x1xf32>
    %67 = vector.broadcast %66 : vector<64x1xf32> to vector<64x128xf32>
    %68 = arith.mulf %63, %67 : vector<64x128xf32>
    %69 = vector.broadcast %5 : vector<1x128xf32> to vector<64x128xf32>
    %70 = arith.mulf %68, %69 : vector<64x128xf32>
    %71 = vector.broadcast %6 : vector<1x128xf32> to vector<64x128xf32>
    %72 = arith.addf %70, %71 : vector<64x128xf32>
    %c0_27 = arith.constant 0 : index
    %c0_28 = arith.constant 0 : index
    %73 = vector.load %arg5[%c0_27, %c0_28] : memref<64x128xf32, #tpu.memory_space<vmem>>, vector<64x128xf32>
    tpu.vector_store %arg5[%c0_27, %c0_28], %72 {strides = array<i32>} : memref<64x128xf32, #tpu.memory_space<vmem>>, vector<64x128xf32>,
    return
  }
  func.func @transform_0(%arg0: i32) -> (i32, i32) {
    %c0_i32 = arith.constant 0 : i32
    %c0_i32_0 = arith.constant 0 : i32
    return %arg0, %c0_i32 : i32, i32
  }
  func.func @transform_1(%arg0: i32) -> (i32, i32) {
    %c0_i32 = arith.constant 0 : i32
    %c0_i32_0 = arith.constant 0 : i32
    %c0_i32_1 = arith.constant 0 : i32
    return %c0_i32, %c0_i32_0 : i32, i32
  }
  func.func @transform_2(%arg0: i32) -> (i32, i32) {
    %c0_i32 = arith.constant 0 : i32
    %c0_i32_0 = arith.constant 0 : i32
    %c0_i32_1 = arith.constant 0 : i32
    return %c0_i32, %c0_i32_0 : i32, i32
  }
  func.func @transform_3(%arg0: i32) -> (i32, i32) {
    %c0_i32 = arith.constant 0 : i32
    %c0_i32_0 = arith.constant 0 : i32
    %c0_i32_1 = arith.constant 0 : i32
    return %c0_i32, %c0_i32_0 : i32, i32
  }
  func.func @transform_4(%arg0: i32) -> (i32, i32) {
    %c0_i32 = arith.constant 0 : i32
    %c0_i32_0 = arith.constant 0 : i32
    return %arg0, %c0_i32 : i32, i32
  }
}

</mosaic_0001>

<llo_original>
// kernel: tpu_custom_call.1
$region0: #{tpu_custom_call.1}
  #allocation0 [shape = 'u32[]', space=smem, size = 0x4, offset = 0x4, fixed_abs, tag = 'smem constant byte address 0x4 - core index']
  #allocation1 [shape = 'u32[144,128]{1,0:T(1,128)}', space=vmem, size = 0x12000, scoped, tag = 'internal scratch']
  %s0 = inlined_call_operand.vmem [shape: f32[256,4], index: 0, kind: input, shape index: {}]
  %s1 = inlined_call_operand.vmem [shape: f32[4,128], index: 1, kind: input, shape index: {}]
  %s2 = inlined_call_operand.vmem [shape: f32[8,128], index: 2, kind: input, shape index: {}]
  %s3 = inlined_call_operand.vmem [shape: f32[128,128], index: 3, kind: input, shape index: {}]
  %s4 = inlined_call_operand.hbm [shape: f32[256,128], index: 4, kind: output, shape index: {}]
  %s5 = sld [smem:[#allocation0]]
  $region49: #{tpu_custom_call.1} parent=0
    _
  %s7 = ssub.s32 1, %s5
  %s8 = scalar_select 0, %s7, %s5
  $region1: #{tpu_custom_call.1} parent=0
    #allocation2 [shape = 'u8[65536]{0}', space=vmem, size = 0x10000, scoped, tag = 'output window, operand 0']
    #allocation3 [shape = 's32[2]{0}', space=sflag, size = 0x8, scoped, tag = 'scoped memory for tpu_custom_call.1']
    %9 = vsyncpa [#allocation3], 0
    %s10 = scalar_lea.sflag [#allocation3], 1
    %11 = vsyncpa %s10, 0
    loop: start=0, step=1, limit=6
    $region2: #{tpu_custom_call.1} parent=1 // loop_pre_header
      _
    $region3: #{tpu_custom_call.1} parent=1 // loop_header
      %s13 = sphi 0, %s17
      %p14 = scmp.ge.s32.totalorder %s13, 6
      %s23 = sphi 0, %s25
      %s26 = sphi 0, %s23
      %s27 = sphi 0, %s26
      %s43 = sphi 0, %s27
      %s47 = sphi 0, %s47
      %s49 = sphi 0, %s47
      %s50 = sphi 0, %s49
      %s64 = sphi 0, %s50
      %s68 = sphi 0, %s68
      %s70 = sphi 0, %s68
      %s71 = sphi 0, %s70
      %s85 = sphi 0, %s71
      %s89 = sphi 0, %s89
      %s91 = sphi 0, %s89
      %s92 = sphi 0, %s91
      %s106 = sphi 0, %s92
      %s112 = sphi 0, %s114
      %s115 = sphi 0, %s112
      %s116 = sphi 0, %s115
      %s132 = sphi 0, %s116
    $region4: #{tpu_custom_call.1} parent=1 // loop_header_branch
      %16 = sbr.rel (%p14) target = $region8
    $region5: #{tpu_custom_call.1} parent=1 // loop_body
      %s18 = ssub.s32 %s13, 1
      %s19 = ssub.s32 %s13, 2
      %s20 = sadd.s32 %s13, 1
      %s21 = ssub.s32 %s13, %s20
      %p22 = scmp.eq.s32.totalorder %s21, 0
      %s24 = sadd.s32 %s23, 1
      %s25 = scalar_select %p22, %s23, %s24
      %p28 = pneg %p22
      %p29 = scmp.eq.s32.totalorder %s13, 3
      %p30 = por %p28, %p29
      %p31 = scmp.ne.s32.totalorder %s23, %s26
      %p32 = scmp.eq.s32.totalorder %s13, 0
      %p33 = por %p31, %p32
      %p34 = scmp.ne.s32.totalorder %s23, %s26
      %p35 = scmp.eq.s32.totalorder %s18, 3
      %p36 = por %p34, %p35
      %p37 = scmp.ne.s32.totalorder %s26, %s27
      %p38 = scmp.eq.s32.totalorder %s18, 0
      %p39 = por %p37, %p38
      %p40 = scmp.ne.s32.totalorder %s26, %s27
      %p41 = scmp.eq.s32.totalorder %s19, 3
      %p42 = por %p40, %p41
      %p44 = scmp.ne.s32.totalorder %s27, %s43
      %p45 = scmp.eq.s32.totalorder %s19, 0
      %p46 = por %p44, %p45
      %s48 = sadd.s32 %s47, 1
      %p51 = scmp.eq.s32.totalorder %s13, 3
      %p52 = scmp.ne.s32.totalorder %s47, %s49
      %p53 = scmp.eq.s32.totalorder %s13, 0
      %p54 = por %p52, %p53
      %p55 = scmp.ne.s32.totalorder %s47, %s49
      %p56 = scmp.eq.s32.totalorder %s18, 3
      %p57 = por %p55, %p56
      %p58 = scmp.ne.s32.totalorder %s49, %s50
      %p59 = scmp.eq.s32.totalorder %s18, 0
      %p60 = por %p58, %p59
      %p61 = scmp.ne.s32.totalorder %s49, %s50
      %p62 = scmp.eq.s32.totalorder %s19, 3
      %p63 = por %p61, %p62
      %p65 = scmp.ne.s32.totalorder %s50, %s64
      %p66 = scmp.eq.s32.totalorder %s19, 0
      %p67 = por %p65, %p66
      %s69 = sadd.s32 %s68, 1
      %p72 = scmp.eq.s32.totalorder %s13, 3
      %p73 = scmp.ne.s32.totalorder %s68, %s70
      %p74 = scmp.eq.s32.totalorder %s13, 0
      %p75 = por %p73, %p74
      %p76 = scmp.ne.s32.totalorder %s68, %s70
      %p77 = scmp.eq.s32.totalorder %s18, 3
      %p78 = por %p76, %p77
      %p79 = scmp.ne.s32.totalorder %s70, %s71
      %p80 = scmp.eq.s32.totalorder %s18, 0
      %p81 = por %p79, %p80
      %p82 = scmp.ne.s32.totalorder %s70, %s71
      %p83 = scmp.eq.s32.totalorder %s19, 3
      %p84 = por %p82, %p83
      %p86 = scmp.ne.s32.totalorder %s71, %s85
      %p87 = scmp.eq.s32.totalorder %s19, 0
      %p88 = por %p86, %p87
      %s90 = sadd.s32 %s89, 1
      %p93 = scmp.eq.s32.totalorder %s13, 3
      %p94 = scmp.ne.s32.totalorder %s89, %s91
      %p95 = scmp.eq.s32.totalorder %s13, 0
      %p96 = por %p94, %p95
      %p97 = scmp.ne.s32.totalorder %s89, %s91
      %p98 = scmp.eq.s32.totalorder %s18, 3
      %p99 = por %p97, %p98
      %p100 = scmp.ne.s32.totalorder %s91, %s92
      %p101 = scmp.eq.s32.totalorder %s18, 0
      %p102 = por %p100, %p101
      %p103 = scmp.ne.s32.totalorder %s91, %s92
      %p104 = scmp.eq.s32.totalorder %s19, 3
      %p105 = por %p103, %p104
      %p107 = scmp.ne.s32.totalorder %s92, %s106
      %p108 = scmp.eq.s32.totalorder %s19, 0
      %p109 = por %p107, %p108
      %s110 = ssub.s32 %s13, %s20
      %p111 = scmp.eq.s32.totalorder %s110, 0
      %s113 = sadd.s32 %s112, 1
      %s114 = scalar_select %p111, %s112, %s113
      %p117 = pneg %p111
      %p118 = scmp.eq.s32.totalorder %s13, 3
      %p119 = por %p117, %p118
      %p120 = scmp.ne.s32.totalorder %s112, %s115
      %p121 = scmp.eq.s32.totalorder %s13, 0
      %p122 = por %p120, %p121
      %p123 = scmp.ne.s32.totalorder %s112, %s115
      %p124 = scmp.eq.s32.totalorder %s18, 3
      %p125 = por %p123, %p124
      %p126 = scmp.ne.s32.totalorder %s115, %s116
      %p127 = scmp.eq.s32.totalorder %s18, 0
      %p128 = por %p126, %p127
      %p129 = scmp.ne.s32.totalorder %s115, %s116
      %p130 = scmp.eq.s32.totalorder %s19, 3
      %p131 = por %p129, %p130
      %p133 = scmp.ne.s32.totalorder %s116, %s132
      %p134 = scmp.eq.s32.totalorder %s19, 0
      %p135 = por %p133, %p134
      %p136 = scmp.le.s32.totalorder 1, %s13
      %p137 = scmp.lt.s32.totalorder %s13, 5
      %p138 = pnand %p136, %p137
      %p139 = pneg %p138
      // Predicated region
      $region9: #{tpu_custom_call.1} parent=5 // pred_check
        _
      $region10: #{tpu_custom_call.1} parent=5 // pred_check_branch
        %141 = sbr.rel (%p138) target = $region12
      $region11: #{tpu_custom_call.1} parent=5 // pred_region
        %s142 = ssub.s32 %s13, 1
        // Predicated region
        $region13: #{tpu_custom_call.1} parent=11 // pred_check
          %p143 = pneg %p60
        $region14: #{tpu_custom_call.1} parent=11 // pred_check_branch
          %145 = sbr.rel (%p143) target = $region16
        $region15: #{tpu_custom_call.1} parent=11 // pred_region
          _
        $region16: #{tpu_custom_call.1} parent=11 // pred_fallthru
          _
        // Predicated region
        $region17: #{tpu_custom_call.1} parent=11 // pred_check
          %p146 = pneg %p81
        $region18: #{tpu_custom_call.1} parent=11 // pred_check_branch
          %148 = sbr.rel (%p146) target = $region20
        $region19: #{tpu_custom_call.1} parent=11 // pred_region
          _
        $region20: #{tpu_custom_call.1} parent=11 // pred_fallthru
          _
        // Predicated region
        $region21: #{tpu_custom_call.1} parent=11 // pred_check
          %p149 = pneg %p102
        $region22: #{tpu_custom_call.1} parent=11 // pred_check_branch
          %151 = sbr.rel (%p149) target = $region24
        $region23: #{tpu_custom_call.1} parent=11 // pred_region
          _
        $region24: #{tpu_custom_call.1} parent=11 // pred_fallthru
          _
      $region12: #{tpu_custom_call.1} parent=5 // pred_fallthru
        _
      %p152 = scmp.lt.s32.totalorder %s13, 4
      // Predicated region
      $region25: #{tpu_custom_call.1} parent=5 // pred_check
        %p153 = pneg %p152
      $region26: #{tpu_custom_call.1} parent=5 // pred_check_branch
        %155 = sbr.rel (%p153) target = $region28
      $region27: #{tpu_custom_call.1} parent=5 // pred_region
        // Predicated region
        $region29: #{tpu_custom_call.1} parent=27 // pred_check
          %p156 = pneg %p33
        $region30: #{tpu_custom_call.1} parent=27 // pred_check_branch
          %158 = sbr.rel (%p156) target = $region32
        $region31: #{tpu_custom_call.1} parent=27 // pred_region
          %s159 = smul.u32 8, %s13
          %p160 = scmp.lt.s32.totalorder %s159, 31
          %s161 = scalar_select %p160, %s159, 31
          %s162 = smul.addr %s161, 8
          %s163 = scalar_lea.vmem %s0, %s162
          %s164 = smul.u32 8, %s13
        $region32: #{tpu_custom_call.1} parent=27 // pred_fallthru
          _
      $region28: #{tpu_custom_call.1} parent=5 // pred_fallthru
        _
      %p165 = scmp.le.s32.totalorder 1, %s13
      %p166 = scmp.lt.s32.totalorder %s13, 5
      %p167 = pnand %p165, %p166
      %p168 = pneg %p167
      // Predicated region
      $region33: #{tpu_custom_call.1} parent=5 // pred_check
        _
      $region34: #{tpu_custom_call.1} parent=5 // pred_check_branch
        %170 = sbr.rel (%p167) target = $region36
      $region35: #{tpu_custom_call.1} parent=5 // pred_region
        %s171 = ssub.s32 %s13, 1
        %s172 = smul.u32 8, %s18
        %p173 = scmp.lt.s32.totalorder %s172, 31
        %s174 = scalar_select %p173, %s172, 31
        %s175 = smul.addr %s174, 8
        %s176 = scalar_lea.vmem %s0, %s175
        %p177 = pneg %p39
        %p178 = pneg %p36
        %p179 = pneg %p60
        %p180 = pneg %p57
        %p181 = pneg %p81
        %p182 = pneg %p78
        %p183 = pneg %p102
        %p184 = pneg %p99
        %p185 = pneg %p128
        %p186 = pneg %p125
        %s187 = sand.u32 %s115, 1
        %s188 = scalar_lea.sflag [#allocation3], %s187
        %s189 = sand.u32 %s115, 1
        %s190 = smul.addr %s189, 64
        %s191 = scalar_lea.vmem [#allocation2], %s190
        %s192 = smul.u32 8, %s18
        %p193 = scmp.lt.s32.totalorder %s192, 31
        %s194 = scalar_select %p193, %s192, 31
        %s195 = smul.addr %s194, 8
        %s196 = scalar_lea.vmem %s0, %s195
        %s197 = smul.u32 8, %s18
        %s198 = smul.u32 8, %s18
        %v199 = vld [vmem:[%s196] sm:$0xff]
        %v200 = vld [vmem:[%s196 + $0x8] sm:$0xff]
        %v201 = vld [vmem:[%s196 + $0x10] sm:$0xff]
        %v202 = vld [vmem:[%s196 + $0x18] sm:$0xff]
        %v203 = vld [vmem:[%s196 + $0x20] sm:$0xff]
        %v204 = vld [vmem:[%s196 + $0x28] sm:$0xff]
        %v205 = vld [vmem:[%s196 + $0x30] sm:$0xff]
        %v206 = vld [vmem:[%s196 + $0x38] sm:$0xff]
        %v207 = vld [vmem:[%s2] sm:$0x1]
        %v208 = vld [vmem:[%s2 + $0x1] sm:$0x1]
        %v209 = vld [vmem:[%s2 + $0x2] sm:$0x1]
        %v210 = vld [vmem:[%s2 + $0x3] sm:$0x1]
        %v211 = vld [vmem:[%s2 + $0x4] sm:$0x1]
        %v212 = vld [vmem:[%s2 + $0x5] sm:$0x1]
        %v213 = vld [vmem:[%s1] sm:$0xf]
        %v214 = vlaneseq
        %v215 = vshrl.u32 %v214, 7
        %v216 = vsub.s32 0, %v215
        %v217 = vrot.slane %v207, %v216
        %vm218 = vcmask 31744
        %v220 = vsel %vm218, %v199, 0
        %v223 = vsel %vm218, %v200, 0
        %v226 = vsel %vm218, %v201, 0
        %v229 = vsel %vm218, %v202, 0
        %v232 = vsel %vm218, %v203, 0
        %v235 = vsel %vm218, %v204, 0
        %v238 = vsel %vm218, %v205, 0
        %v241 = vsel %vm218, %v206, 0
        %vm243 = vcmask 1043456
        %v245 = vsel %vm243, %v213, 0
        %247 = vmatprep.subr.mxu0 0.0
        %248 = vmatpush1.msra.mxu0 %v245
        %249 = vmatprep.subr.mxu0 0.0
        %250 = vmatpush1.msra.mxu0 0.0
        %251 = vmatprep.subr.mxu0 0.0
        %252 = vmatpush1.msra.mxu0 0.0
        %253 = vmatprep.subr.mxu0 0.0
        %254 = vmatpush1.msra.mxu0 0.0
        %255 = vmatprep.subr.mxu0 0.0
        %256 = vmatpush1.msra.mxu0 0.0
        %257 = vmatprep.subr.mxu0 0.0
        %258 = vmatpush1.msra.mxu0 0.0
        %259 = vmatprep.subr.mxu0 0.0
        %260 = vmatpush1.msra.mxu0 0.0
        %261 = vmatprep.subr.mxu0 0.0
        %262 = vmatpush1.msra.mxu0 0.0
        %263 = vmatprep.subr.mxu0 0.0
        %264 = vmatpush1.msra.mxu0 0.0
        %265 = vmatprep.subr.mxu0 0.0
        %266 = vmatpush1.msra.mxu0 0.0
        %267 = vmatprep.subr.mxu0 0.0
        %268 = vmatpush1.msra.mxu0 0.0
        %269 = vmatprep.subr.mxu0 0.0
        %270 = vmatpush1.msra.mxu0 0.0
        %271 = vmatprep.subr.mxu0 0.0
        %272 = vmatpush1.msra.mxu0 0.0
        %273 = vmatprep.subr.mxu0 0.0
        %274 = vmatpush1.msra.mxu0 0.0
        %275 = vmatprep.subr.mxu0 0.0
        %276 = vmatpush1.msra.mxu0 0.0
        %277 = vmatprep.subr.mxu0 0.0
        %278 = vmatpush1.msra.mxu0 0.0
        %279 = vmatprep.subr.mxu0 0.0
        %280 = vmatpush1.msra.mxu0 0.0
        %281 = vmatprep.subr.mxu0 0.0
        %282 = vmatpush1.msra.mxu0 0.0
        %283 = vmatprep.subr.mxu0 0.0
        %284 = vmatpush1.msra.mxu0 0.0
        %285 = vmatprep.subr.mxu0 0.0
        %286 = vmatpush1.msra.mxu0 0.0
        %287 = vmatprep.subr.mxu0 0.0
        %288 = vmatpush1.msra.mxu0 0.0
        %289 = vmatprep.subr.mxu0 0.0
        %290 = vmatpush1.msra.mxu0 0.0
        %291 = vmatprep.subr.mxu0 0.0
        %292 = vmatpush1.msra.mxu0 0.0
        %293 = vmatprep.subr.mxu0 0.0
        %294 = vmatpush1.msra.mxu0 0.0
        %295 = vmatprep.subr.mxu0 0.0
        %296 = vmatpush1.msra.mxu0 0.0
        %297 = vmatprep.subr.mxu0 0.0
        %298 = vmatpush1.msra.mxu0 0.0
        %299 = vmatprep.subr.mxu0 0.0
        %300 = vmatpush1.msra.mxu0 0.0
        %301 = vmatprep.subr.mxu0 0.0
        %302 = vmatpush1.msra.mxu0 0.0
        %303 = vmatprep.subr.mxu0 0.0
        %304 = vmatpush1.msra.mxu0 0.0
        %305 = vmatprep.subr.mxu0 0.0
        %306 = vmatpush1.msra.mxu0 0.0
        %307 = vmatprep.subr.mxu0 0.0
        %308 = vmatpush1.msra.mxu0 0.0
        %309 = vmatprep.subr.mxu0 0.0
        %310 = vmatpush1.msra.mxu0 0.0
        %311 = vmatprep.mubr.f32.mxu0 0.0
        %312 = vmatmul.mubr.f32.gmra.mrb[0].mxu0 %v220
        %v313 = vpop.f32.mrb[0].mxu0
        %v314 = vadd.f32 %v217, %v313
        %v315 = vpop.f32.mrb[0].mxu0
        %316 = vmatprep.mubr.f32.mxu0 0.0
        %317 = vmatmul.mubr.f32.gmra.mrb[0].mxu0 %v223
        %v318 = vpop.f32.mrb[0].mxu0
        %v319 = vadd.f32 %v217, %v318
        %v320 = vpop.f32.mrb[0].mxu0
        %321 = vmatprep.mubr.f32.mxu0 0.0
        %322 = vmatmul.mubr.f32.gmra.mrb[0].mxu0 %v226
        %v323 = vpop.f32.mrb[0].mxu0
        %v324 = vadd.f32 %v217, %v323
        %v325 = vpop.f32.mrb[0].mxu0
        %326 = vmatprep.mubr.f32.mxu0 0.0
        %327 = vmatmul.mubr.f32.gmra.mrb[0].mxu0 %v229
        %v328 = vpop.f32.mrb[0].mxu0
        %v329 = vadd.f32 %v217, %v328
        %v330 = vpop.f32.mrb[0].mxu0
        %331 = vmatprep.mubr.f32.mxu0 0.0
        %332 = vmatmul.mubr.f32.gmra.mrb[0].mxu0 %v232
        %v333 = vpop.f32.mrb[0].mxu0
        %v334 = vadd.f32 %v217, %v333
        %v335 = vpop.f32.mrb[0].mxu0
        %336 = vmatprep.mubr.f32.mxu0 0.0
        %337 = vmatmul.mubr.f32.gmra.mrb[0].mxu0 %v235
        %v338 = vpop.f32.mrb[0].mxu0
        %v339 = vadd.f32 %v217, %v338
        %v340 = vpop.f32.mrb[0].mxu0
        %341 = vmatprep.mubr.f32.mxu0 0.0
        %342 = vmatmul.mubr.f32.gmra.mrb[0].mxu0 %v238
        %v343 = vpop.f32.mrb[0].mxu0
        %v344 = vadd.f32 %v217, %v343
        %v345 = vpop.f32.mrb[0].mxu0
        %346 = vmatprep.mubr.f32.mxu0 0.0
        %347 = vmatmul.mubr.f32.gmra.mrb[0].mxu0 %v241
        %v348 = vpop.f32.mrb[0].mxu0
        %v349 = vadd.f32 %v217, %v348
        %v350 = vpop.f32.mrb[0].mxu0
        %351 = vdwg.mxu0
        %vm352 = vcmp.gt.f32.partialorder %v314, 0.0
        %vm353 = vcmp.gt.f32.partialorder %v319, 0.0
        %vm354 = vcmp.gt.f32.partialorder %v324, 0.0
        %vm355 = vcmp.gt.f32.partialorder %v329, 0.0
        %vm356 = vcmp.gt.f32.partialorder %v334, 0.0
        %vm357 = vcmp.gt.f32.partialorder %v339, 0.0
        %vm358 = vcmp.gt.f32.partialorder %v344, 0.0
        %vm359 = vcmp.gt.f32.partialorder %v349, 0.0
        %v360 = vmul.f32 %v314, 0.01
        %v361 = vmul.f32 %v319, 0.01
        %v362 = vmul.f32 %v324, 0.01
        %v363 = vmul.f32 %v329, 0.01
        %v364 = vmul.f32 %v334, 0.01
        %v365 = vmul.f32 %v339, 0.01
        %v366 = vmul.f32 %v344, 0.01
        %v367 = vmul.f32 %v349, 0.01
        %v368 = vsel %vm352, %v314, %v360
        %v369 = vsel %vm353, %v319, %v361
        %v370 = vsel %vm354, %v324, %v362
        %v371 = vsel %vm355, %v329, %v363
        %v372 = vsel %vm356, %v334, %v364
        %v373 = vsel %vm357, %v339, %v365
        %v374 = vsel %vm358, %v344, %v366
        %v375 = vsel %vm359, %v349, %v367
        %376 = vadd.xlane.f32.xlu0 %v368
        %v377 = vpop.xlane.xlu0 %376
        %378 = vadd.xlane.f32.xlu0 %v369
        %v379 = vpop.xlane.xlu0 %378
        %380 = vadd.xlane.f32.xlu0 %v370
        %v381 = vpop.xlane.xlu0 %380
        %382 = vadd.xlane.f32.xlu0 %v371
        %v383 = vpop.xlane.xlu0 %382
        %384 = vadd.xlane.f32.xlu0 %v372
        %v385 = vpop.xlane.xlu0 %384
        %386 = vadd.xlane.f32.xlu0 %v373
        %v387 = vpop.xlane.xlu0 %386
        %388 = vadd.xlane.f32.xlu0 %v374
        %v389 = vpop.xlane.xlu0 %388
        %390 = vadd.xlane.f32.xlu0 %v375
        %v391 = vpop.xlane.xlu0 %390
        %v392 = vrcp.pop 128.0
        %v393 = vmul.f32 %v377, %v392
        %v394 = vmul.f32 %v379, %v392
        %v395 = vmul.f32 %v381, %v392
        %v396 = vmul.f32 %v383, %v392
        %v397 = vmul.f32 %v385, %v392
        %v398 = vmul.f32 %v387, %v392
        %v399 = vmul.f32 %v389, %v392
        %v400 = vmul.f32 %v391, %v392
        %v401 = vsub.f32 %v368, %v393
        %v402 = vsub.f32 %v369, %v394
        %v403 = vsub.f32 %v370, %v395
        %v404 = vsub.f32 %v371, %v396
        %v405 = vsub.f32 %v372, %v397
        %v406 = vsub.f32 %v373, %v398
        %v407 = vsub.f32 %v374, %v399
        %v408 = vsub.f32 %v375, %v400
        %v409 = vmul.f32 %v401, %v401
        %v410 = vmul.f32 %v402, %v402
        %v411 = vmul.f32 %v403, %v403
        %v412 = vmul.f32 %v404, %v404
        %v413 = vmul.f32 %v405, %v405
        %v414 = vmul.f32 %v406, %v406
        %v415 = vmul.f32 %v407, %v407
        %v416 = vmul.f32 %v408, %v408
        %417 = vadd.xlane.f32.xlu0 %v409
        %v418 = vpop.xlane.xlu0 %417
        %419 = vadd.xlane.f32.xlu0 %v410
        %v420 = vpop.xlane.xlu0 %419
        %421 = vadd.xlane.f32.xlu0 %v411
        %v422 = vpop.xlane.xlu0 %421
        %423 = vadd.xlane.f32.xlu0 %v412
        %v424 = vpop.xlane.xlu0 %423
        %425 = vadd.xlane.f32.xlu0 %v413
        %v426 = vpop.xlane.xlu0 %425
        %427 = vadd.xlane.f32.xlu0 %v414
        %v428 = vpop.xlane.xlu0 %427
        %429 = vadd.xlane.f32.xlu0 %v415
        %v430 = vpop.xlane.xlu0 %429
        %431 = vadd.xlane.f32.xlu0 %v416
        %v432 = vpop.xlane.xlu0 %431
        %v433 = vmul.f32 %v418, %v392
        %v434 = vmul.f32 %v420, %v392
        %v435 = vmul.f32 %v422, %v392
        %v436 = vmul.f32 %v424, %v392
        %v437 = vmul.f32 %v426, %v392
        %v438 = vmul.f32 %v428, %v392
        %v439 = vmul.f32 %v430, %v392
        %v440 = vmul.f32 %v432, %v392
        %v441 = vadd.f32 %v433, 1e-05
        %v442 = vadd.f32 %v434, 1e-05
        %v443 = vadd.f32 %v435, 1e-05
        %v444 = vadd.f32 %v436, 1e-05
        %v445 = vadd.f32 %v437, 1e-05
        %v446 = vadd.f32 %v438, 1e-05
        %v447 = vadd.f32 %v439, 1e-05
        %v448 = vadd.f32 %v440, 1e-05
        %v449 = vrsqrt.pop %v441
        %v450 = vrsqrt.pop %v442
        %v451 = vrsqrt.pop %v443
        %v452 = vrsqrt.pop %v444
        %v453 = vrsqrt.pop %v445
        %v454 = vrsqrt.pop %v446
        %v455 = vrsqrt.pop %v447
        %v456 = vrsqrt.pop %v448
        %v457 = vmul.f32 %v401, %v449
        %v458 = vmul.f32 %v402, %v450
        %v459 = vmul.f32 %v403, %v451
        %v460 = vmul.f32 %v404, %v452
        %v461 = vmul.f32 %v405, %v453
        %v462 = vmul.f32 %v406, %v454
        %v463 = vmul.f32 %v407, %v455
        %v464 = vmul.f32 %v408, %v456
        %v465 = vlaneseq
        %v466 = vshrl.u32 %v465, 7
        %v467 = vsub.s32 0, %v466
        %v468 = vrot.slane %v208, %v467
        %v469 = vmul.f32 %v457, %v468
        %v470 = vmul.f32 %v458, %v468
        %v471 = vmul.f32 %v459, %v468
        %v472 = vmul.f32 %v460, %v468
        %v473 = vmul.f32 %v461, %v468
        %v474 = vmul.f32 %v462, %v468
        %v475 = vmul.f32 %v463, %v468
        %v476 = vmul.f32 %v464, %v468
        %v477 = vlaneseq
        %v478 = vshrl.u32 %v477, 7
        %v479 = vsub.s32 0, %v478
        %v480 = vrot.slane %v209, %v479
        %v481 = vadd.f32 %v469, %v480
        %v482 = vadd.f32 %v470, %v480
        %v483 = vadd.f32 %v471, %v480
        %v484 = vadd.f32 %v472, %v480
        %v485 = vadd.f32 %v473, %v480
        %v486 = vadd.f32 %v474, %v480
        %v487 = vadd.f32 %v475, %v480
        %v488 = vadd.f32 %v476, %v480
        %v489 = vld [vmem:[%s3] sm:$0xff]
        %v490 = vld [vmem:[%s3 + $0x8] sm:$0xff]
        %v491 = vld [vmem:[%s3 + $0x10] sm:$0xff]
        %v492 = vld [vmem:[%s3 + $0x18] sm:$0xff]
        %v493 = vld [vmem:[%s3 + $0x20] sm:$0xff]
        %v494 = vld [vmem:[%s3 + $0x28] sm:$0xff]
        %v495 = vld [vmem:[%s3 + $0x30] sm:$0xff]
        %v496 = vld [vmem:[%s3 + $0x38] sm:$0xff]
        %v497 = vld [vmem:[%s3 + $0x40] sm:$0xff]
        %v498 = vld [vmem:[%s3 + $0x48] sm:$0xff]
        %v499 = vld [vmem:[%s3 + $0x50] sm:$0xff]
        %v500 = vld [vmem:[%s3 + $0x58] sm:$0xff]
        %v501 = vld [vmem:[%s3 + $0x60] sm:$0xff]
        %v502 = vld [vmem:[%s3 + $0x68] sm:$0xff]
        %v503 = vld [vmem:[%s3 + $0x70] sm:$0xff]
        %v504 = vld [vmem:[%s3 + $0x78] sm:$0xff]
        %v505 = vlaneseq
        %v506 = vshrl.u32 %v505, 7
        %v507 = vsub.s32 0, %v506
        %v508 = vrot.slane %v210, %v507
        %509 = vmatprep.subr.mxu0 0.0
        %510 = vmatpush1.msra.mxu0 %v489
        %511 = vmatprep.subr.mxu0 0.0
        %512 = vmatpush1.msra.mxu0 %v490
        %513 = vmatprep.subr.mxu0 0.0
        %514 = vmatpush1.msra.mxu0 %v491
        %515 = vmatprep.subr.mxu0 0.0
        %516 = vmatpush1.msra.mxu0 %v492
        %517 = vmatprep.subr.mxu0 0.0
        %518 = vmatpush1.msra.mxu0 %v493
        %519 = vmatprep.subr.mxu0 0.0
        %520 = vmatpush1.msra.mxu0 %v494
        %521 = vmatprep.subr.mxu0 0.0
        %522 = vmatpush1.msra.mxu0 %v495
        %523 = vmatprep.subr.mxu0 0.0
        %524 = vmatpush1.msra.mxu0 %v496
        %525 = vmatprep.subr.mxu0 0.0
        %526 = vmatpush1.msra.mxu0 %v497
        %527 = vmatprep.subr.mxu0 0.0
        %528 = vmatpush1.msra.mxu0 %v498
        %529 = vmatprep.subr.mxu0 0.0
        %530 = vmatpush1.msra.mxu0 %v499
        %531 = vmatprep.subr.mxu0 0.0
        %532 = vmatpush1.msra.mxu0 %v500
        %533 = vmatprep.subr.mxu0 0.0
        %534 = vmatpush1.msra.mxu0 %v501
        %535 = vmatprep.subr.mxu0 0.0
        %536 = vmatpush1.msra.mxu0 %v502
        %537 = vmatprep.subr.mxu0 0.0
        %538 = vmatpush1.msra.mxu0 %v503
        %539 = vmatprep.subr.mxu0 0.0
        %540 = vmatpush1.msra.mxu0 %v504
        %541 = vmatprep.subr.mxu0 0.0
        %542 = vmatpush1.msra.mxu0 0.0
        %543 = vmatprep.subr.mxu0 0.0
        %544 = vmatpush1.msra.mxu0 0.0
        %545 = vmatprep.subr.mxu0 0.0
        %546 = vmatpush1.msra.mxu0 0.0
        %547 = vmatprep.subr.mxu0 0.0
        %548 = vmatpush1.msra.mxu0 0.0
        %549 = vmatprep.subr.mxu0 0.0
        %550 = vmatpush1.msra.mxu0 0.0
        %551 = vmatprep.subr.mxu0 0.0
        %552 = vmatpush1.msra.mxu0 0.0
        %553 = vmatprep.subr.mxu0 0.0
        %554 = vmatpush1.msra.mxu0 0.0
        %555 = vmatprep.subr.mxu0 0.0
        %556 = vmatpush1.msra.mxu0 0.0
        %557 = vmatprep.subr.mxu0 0.0
        %558 = vmatpush1.msra.mxu0 0.0
        %559 = vmatprep.subr.mxu0 0.0
        %560 = vmatpush1.msra.mxu0 0.0
        %561 = vmatprep.subr.mxu0 0.0
        %562 = vmatpush1.msra.mxu0 0.0
        %563 = vmatprep.subr.mxu0 0.0
        %564 = vmatpush1.msra.mxu0 0.0
        %565 = vmatprep.subr.mxu0 0.0
        %566 = vmatpush1.msra.mxu0 0.0
        %567 = vmatprep.subr.mxu0 0.0
        %568 = vmatpush1.msra.mxu0 0.0
        %569 = vmatprep.subr.mxu0 0.0
        %570 = vmatpush1.msra.mxu0 0.0
        %571 = vmatprep.subr.mxu0 0.0
        %572 = vmatpush1.msra.mxu0 0.0
        %573 = vmatprep.mubr.f32.mxu0 0.0
        %574 = vmatmul.mubr.f32.gmra.mrb[0].mxu0 %v481
        %v575 = vpop.f32.mrb[0].mxu0
        %v576 = vadd.f32 %v508, %v575
        %v577 = vpop.f32.mrb[0].mxu0
        %578 = vmatprep.mubr.f32.mxu0 0.0
        %579 = vmatmul.mubr.f32.gmra.mrb[0].mxu0 %v482
        %v580 = vpop.f32.mrb[0].mxu0
        %v581 = vadd.f32 %v508, %v580
        %v582 = vpop.f32.mrb[0].mxu0
        %583 = vmatprep.mubr.f32.mxu0 0.0
        %584 = vmatmul.mubr.f32.gmra.mrb[0].mxu0 %v483
        %v585 = vpop.f32.mrb[0].mxu0
        %v586 = vadd.f32 %v508, %v585
        %v587 = vpop.f32.mrb[0].mxu0
        %588 = vmatprep.mubr.f32.mxu0 0.0
        %589 = vmatmul.mubr.f32.gmra.mrb[0].mxu0 %v484
        %v590 = vpop.f32.mrb[0].mxu0
        %v591 = vadd.f32 %v508, %v590
        %v592 = vpop.f32.mrb[0].mxu0
        %593 = vmatprep.mubr.f32.mxu0 0.0
        %594 = vmatmul.mubr.f32.gmra.mrb[0].mxu0 %v485
        %v595 = vpop.f32.mrb[0].mxu0
        %v596 = vadd.f32 %v508, %v595
        %v597 = vpop.f32.mrb[0].mxu0
        %598 = vmatprep.mubr.f32.mxu0 0.0
        %599 = vmatmul.mubr.f32.gmra.mrb[0].mxu0 %v486
        %v600 = vpop.f32.mrb[0].mxu0
        %v601 = vadd.f32 %v508, %v600
        %v602 = vpop.f32.mrb[0].mxu0
        %603 = vmatprep.mubr.f32.mxu0 0.0
        %604 = vmatmul.mubr.f32.gmra.mrb[0].mxu0 %v487
        %v605 = vpop.f32.mrb[0].mxu0
        %v606 = vadd.f32 %v508, %v605
        %v607 = vpop.f32.mrb[0].mxu0
        %608 = vmatprep.mubr.f32.mxu0 0.0
        %609 = vmatmul.mubr.f32.gmra.mrb[0].mxu0 %v488
        %v610 = vpop.f32.mrb[0].mxu0
        %v611 = vadd.f32 %v508, %v610
        %v612 = vpop.f32.mrb[0].mxu0
        %613 = vdwg.mxu0
        %vm614 = vcmp.gt.f32.partialorder %v576, 0.0
        %vm615 = vcmp.gt.f32.partialorder %v581, 0.0
        %vm616 = vcmp.gt.f32.partialorder %v586, 0.0
        %vm617 = vcmp.gt.f32.partialorder %v591, 0.0
        %vm618 = vcmp.gt.f32.partialorder %v596, 0.0
        %vm619 = vcmp.gt.f32.partialorder %v601, 0.0
        %vm620 = vcmp.gt.f32.partialorder %v606, 0.0
        %vm621 = vcmp.gt.f32.partialorder %v611, 0.0
        %v622 = vmul.f32 %v576, 0.01
        %v623 = vmul.f32 %v581, 0.01
        %v624 = vmul.f32 %v586, 0.01
        %v625 = vmul.f32 %v591, 0.01
        %v626 = vmul.f32 %v596, 0.01
        %v627 = vmul.f32 %v601, 0.01
        %v628 = vmul.f32 %v606, 0.01
        %v629 = vmul.f32 %v611, 0.01
        %v630 = vsel %vm614, %v576, %v622
        %v631 = vsel %vm615, %v581, %v623
        %v632 = vsel %vm616, %v586, %v624
        %v633 = vsel %vm617, %v591, %v625
        %v634 = vsel %vm618, %v596, %v626
        %v635 = vsel %vm619, %v601, %v627
        %v636 = vsel %vm620, %v606, %v628
        %v637 = vsel %vm621, %v611, %v629
        %638 = vadd.xlane.f32.xlu0 %v630
        %v639 = vpop.xlane.xlu0 %638
        %640 = vadd.xlane.f32.xlu0 %v631
        %v641 = vpop.xlane.xlu0 %640
        %642 = vadd.xlane.f32.xlu0 %v632
        %v643 = vpop.xlane.xlu0 %642
        %644 = vadd.xlane.f32.xlu0 %v633
        %v645 = vpop.xlane.xlu0 %644
        %646 = vadd.xlane.f32.xlu0 %v634
        %v647 = vpop.xlane.xlu0 %646
        %648 = vadd.xlane.f32.xlu0 %v635
        %v649 = vpop.xlane.xlu0 %648
        %650 = vadd.xlane.f32.xlu0 %v636
        %v651 = vpop.xlane.xlu0 %650
        %652 = vadd.xlane.f32.xlu0 %v637
        %v653 = vpop.xlane.xlu0 %652
        %v654 = vmul.f32 %v639, %v392
        %v655 = vmul.f32 %v641, %v392
        %v656 = vmul.f32 %v643, %v392
        %v657 = vmul.f32 %v645, %v392
        %v658 = vmul.f32 %v647, %v392
        %v659 = vmul.f32 %v649, %v392
        %v660 = vmul.f32 %v651, %v392
        %v661 = vmul.f32 %v653, %v392
        %v662 = vsub.f32 %v630, %v654
        %v663 = vsub.f32 %v631, %v655
        %v664 = vsub.f32 %v632, %v656
        %v665 = vsub.f32 %v633, %v657
        %v666 = vsub.f32 %v634, %v658
        %v667 = vsub.f32 %v635, %v659
        %v668 = vsub.f32 %v636, %v660
        %v669 = vsub.f32 %v637, %v661
        %v670 = vmul.f32 %v662, %v662
        %v671 = vmul.f32 %v663, %v663
        %v672 = vmul.f32 %v664, %v664
        %v673 = vmul.f32 %v665, %v665
        %v674 = vmul.f32 %v666, %v666
        %v675 = vmul.f32 %v667, %v667
        %v676 = vmul.f32 %v668, %v668
        %v677 = vmul.f32 %v669, %v669
        %678 = vadd.xlane.f32.xlu0 %v670
        %v679 = vpop.xlane.xlu0 %678
        %680 = vadd.xlane.f32.xlu0 %v671
        %v681 = vpop.xlane.xlu0 %680
        %682 = vadd.xlane.f32.xlu0 %v672
        %v683 = vpop.xlane.xlu0 %682
        %684 = vadd.xlane.f32.xlu0 %v673
        %v685 = vpop.xlane.xlu0 %684
        %686 = vadd.xlane.f32.xlu0 %v674
        %v687 = vpop.xlane.xlu0 %686
        %688 = vadd.xlane.f32.xlu0 %v675
        %v689 = vpop.xlane.xlu0 %688
        %690 = vadd.xlane.f32.xlu0 %v676
        %v691 = vpop.xlane.xlu0 %690
        %692 = vadd.xlane.f32.xlu0 %v677
        %v693 = vpop.xlane.xlu0 %692
        %v694 = vmul.f32 %v679, %v392
        %v695 = vmul.f32 %v681, %v392
        %v696 = vmul.f32 %v683, %v392
        %v697 = vmul.f32 %v685, %v392
        %v698 = vmul.f32 %v687, %v392
        %v699 = vmul.f32 %v689, %v392
        %v700 = vmul.f32 %v691, %v392
        %v701 = vmul.f32 %v693, %v392
        %v702 = vadd.f32 %v694, 1e-05
        %v703 = vadd.f32 %v695, 1e-05
        %v704 = vadd.f32 %v696, 1e-05
        %v705 = vadd.f32 %v697, 1e-05
        %v706 = vadd.f32 %v698, 1e-05
        %v707 = vadd.f32 %v699, 1e-05
        %v708 = vadd.f32 %v700, 1e-05
        %v709 = vadd.f32 %v701, 1e-05
        %v710 = vrsqrt.pop %v702
        %v711 = vrsqrt.pop %v703
        %v712 = vrsqrt.pop %v704
        %v713 = vrsqrt.pop %v705
        %v714 = vrsqrt.pop %v706
        %v715 = vrsqrt.pop %v707
        %v716 = vrsqrt.pop %v708
        %v717 = vrsqrt.pop %v709
        %v718 = vmul.f32 %v662, %v710
        %v719 = vmul.f32 %v663, %v711
        %v720 = vmul.f32 %v664, %v712
        %v721 = vmul.f32 %v665, %v713
        %v722 = vmul.f32 %v666, %v714
        %v723 = vmul.f32 %v667, %v715
        %v724 = vmul.f32 %v668, %v716
        %v725 = vmul.f32 %v669, %v717
        %v726 = vlaneseq
        %v727 = vshrl.u32 %v726, 7
        %v728 = vsub.s32 0, %v727
        %v729 = vrot.slane %v211, %v728
        %v730 = vmul.f32 %v718, %v729
        %v731 = vmul.f32 %v719, %v729
        %v732 = vmul.f32 %v720, %v729
        %v733 = vmul.f32 %v721, %v729
        %v734 = vmul.f32 %v722, %v729
        %v735 = vmul.f32 %v723, %v729
        %v736 = vmul.f32 %v724, %v729
        %v737 = vmul.f32 %v725, %v729
        %v738 = vlaneseq
        %v739 = vshrl.u32 %v738, 7
        %v740 = vsub.s32 0, %v739
        %v741 = vrot.slane %v212, %v740
        %v742 = vadd.f32 %v730, %v741
        %v743 = vadd.f32 %v731, %v741
        %v744 = vadd.f32 %v732, %v741
        %v745 = vadd.f32 %v733, %v741
        %v746 = vadd.f32 %v734, %v741
        %v747 = vadd.f32 %v735, %v741
        %v748 = vadd.f32 %v736, %v741
        %v749 = vadd.f32 %v737, %v741
        %750 = vst [vmem:[%s191] sm:$0xff] %v742
        %751 = vst [vmem:[%s191 + $0x8] sm:$0xff] %v743
        %752 = vst [vmem:[%s191 + $0x10] sm:$0xff] %v744
        %753 = vst [vmem:[%s191 + $0x18] sm:$0xff] %v745
        %754 = vst [vmem:[%s191 + $0x20] sm:$0xff] %v746
        %755 = vst [vmem:[%s191 + $0x28] sm:$0xff] %v747
        %756 = vst [vmem:[%s191 + $0x30] sm:$0xff] %v748
        %757 = vst [vmem:[%s191 + $0x38] sm:$0xff] %v749
        %s758 = sand.u32 %s115, 1
        %s759 = scalar_lea.sflag [#allocation3], %s758
        %s760 = sand.u32 %s115, 1
        %s761 = smul.addr %s760, 64
        %s762 = scalar_lea.vmem [#allocation2], %s761
        // Predicated region
        $region37: #{tpu_custom_call.1} parent=35 // pred_check
          %p763 = pneg %p125
        $region38: #{tpu_custom_call.1} parent=35 // pred_check_branch
          %765 = sbr.rel (%p763) target = $region40
        $region39: #{tpu_custom_call.1} parent=35 // pred_region
          %s766 = smul.u32 8, %s18
          %s768 = ssub.s32 1024, 1024
          %769 = vsyncadd %s759, %s768
          %s770 = smul.addr %s766, 128
          %s771 = scalar_lea.hbm %s4, %s770
          %s772 = sshll.u32 %s762, 4
          %s773 = int_to_ptr.vmem [resolvable:$true] %s772
          %778 = dma.vmem_to_hbm [thread:$0]  %s773, 1024, %s771, %s759, 128, 128, 8
        $region40: #{tpu_custom_call.1} parent=35 // pred_fallthru
          _
      $region36: #{tpu_custom_call.1} parent=5 // pred_fallthru
        _
      %p779 = scmp.le.s32.totalorder 2, %s13
      // Predicated region
      $region41: #{tpu_custom_call.1} parent=5 // pred_check
        %p780 = pneg %p779
      $region42: #{tpu_custom_call.1} parent=5 // pred_check_branch
        %782 = sbr.rel (%p780) target = $region44
      $region43: #{tpu_custom_call.1} parent=5 // pred_region
        %s783 = ssub.s32 %s13, 2
        // Predicated region
        $region45: #{tpu_custom_call.1} parent=43 // pred_check
          %p784 = pneg %p131
        $region46: #{tpu_custom_call.1} parent=43 // pred_check_branch
          %786 = sbr.rel (%p784) target = $region48
        $region47: #{tpu_custom_call.1} parent=43 // pred_region
          %s787 = sand.u32 %s116, 1
          %s788 = scalar_lea.sflag [#allocation3], %s787
          %s789 = sand.u32 %s116, 1
          %s790 = smul.addr %s789, 64
          %s791 = scalar_lea.vmem [#allocation2], %s790
          %792 = dma.done %s788, 1024
        $region48: #{tpu_custom_call.1} parent=43 // pred_fallthru
          _
      $region44: #{tpu_custom_call.1} parent=5 // pred_fallthru
        _
    $region6: #{tpu_custom_call.1} parent=1 // loop_footer
      %s17 = sadd.s32 1, %s13
    $region7: #{tpu_custom_call.1} parent=1 // loop_footer_branch
      %12 = sbr.rel target = $region3
    $region8: #{tpu_custom_call.1} parent=1 // loop_exit
      _
    %793 = vsyncpa [#allocation3], 1
    %s794 = scalar_lea.sflag [#allocation3], 1
    %795 = vsyncpa %s794, 1

</llo_original>
